<compile_context>
chip_gen: v6e
topology: v6e:2x2x1
jax: 0.10.0
libtpu: 0.0.40
codegen_flags: <defaults>
</compile_context>

<pallas_src>
import numpy as np
import jax
import jax.numpy as jnp
from jax.experimental import pallas as pl
from jax.experimental.pallas import tpu as pltpu

_LANE = 128
_SUBLANE = 8


def _gelu_tanh(x):
    # GELU, tanh approximation (matches nn.GELU(approximate='tanh')).
    c = jnp.float32(0.7978845608028654)  # sqrt(2/pi)
    return 0.5 * x * (1.0 + jnp.tanh(c * (x + jnp.float32(0.044715) * x * x * x)))


def upscale_kernel(x_ref, a_ref, b_ref, w_ref, o_ref):
    # x_ref: (Cin, Thw)        tile of pixels, channels on sublanes
    # a_ref: (Cin, 1)          BatchNorm scale (precomputed, f32)
    # b_ref: (Cin, 1)          BatchNorm shift (precomputed, f32)
    # w_ref: (Cout*s*s, Cin)   conv-transpose weight as a matmul (bf16)
    # o_ref: (Cout*s*s, Thw)   lane-dense output tile
    x = x_ref[...].astype(jnp.float32)
    a = a_ref[...].astype(jnp.float32)
    b = b_ref[...].astype(jnp.float32)
    y = _gelu_tanh(x * a + b)            # BN (eval affine) + GELU in f32 (v5e-safe)
    y = y.astype(w_ref.dtype)            # bf16 operands -> full MXU input rate
    out = jnp.dot(w_ref[...], y, preferred_element_type=jnp.float32)
    o_ref[...] = out.astype(o_ref.dtype)


def _round_up(x, m):
    return ((x + m - 1) // m) * m


def _vmem_limits():
    """Generation-aware (budget_for_tiling, mosaic_vmem_limit) in bytes."""
    try:
        cap = int(pltpu.get_tpu_info().vmem_capacity_bytes)
    except Exception:
        cap = 64 * 1024 * 1024                      # v7x-safe fallback
    # v7x (64 MiB): limit 48 MiB / budget ~31 MiB.
    # v5e/v6e (128 MiB): limit 96 MiB / budget ~62 MiB.
    limit = max(32 * 1024 * 1024, min(int(cap * 0.75), cap - 16 * 1024 * 1024))
    budget = int(limit * 0.65)
    return budget, limit


def _pick_tile(hw, batch, cin, n_cols, x_it, w_it, o_it, vmem_budget,
               max_tile_cols=16384):
    """Pick a lane-aligned pixel-tile width and tile count."""
    cin_lane = _round_up(cin, _LANE)        # weight block pads Cin up to 128 lanes
    cin_sub = _round_up(cin, _SUBLANE)
    ncols_sub = _round_up(n_cols, _SUBLANE)

    # Grid-invariant VMEM (double-buffered, (sublane,lane)-padded):
    #   conv weight (n_cols, Cin) + BN a,b as (Cin,1)->(Cin,128) f32 blocks.
    resident = (2 * ncols_sub * cin_lane * w_it
                + 2 * 2 * cin_sub * _LANE * 4)

    # Per pixel-column VMEM: double-buffered x / out tiles plus in-kernel
    # temporaries (f32 x copy, bf16 activations, f32 accumulator).
    per_col = (2 * cin_sub * x_it + 2 * ncols_sub * o_it
               + cin_sub * (4 + 2) + ncols_sub * 4)

    cap = (vmem_budget - resident) // max(per_col, 1)
    cap = max(_LANE, (cap // _LANE) * _LANE)
    cap = min(cap, max_tile_cols)

    # Enough grid steps: >=4 total so both v7x TensorCores get work, >=8 for
    # large images so the software pipeline amortizes prologue/epilogue.
    min_steps = 8 if hw >= 8192 else 4
    want_tiles = max(1, -(-min_steps // max(batch, 1)))
    steps_cols = _round_up(max(1, -(-hw // want_tiles)), _LANE)

    thw = max(_LANE, min(cap, steps_cols, _round_up(hw, _LANE)))
    return thw, int(pl.cdiv(hw, thw))


def upscale_forward(x_nchw, weight, gamma, beta, running_mean, running_var,
                    scale, eps=1e-5, out_dtype=None):
    """x_nchw: (B, Cin, H, W); weight: (Cin, Cout, scale, scale) (PyTorch layout)."""
    B, Cin, H, W = x_nchw.shape
    w_cin, Cout, kH, kW = weight.shape
    assert w_cin == Cin and kH == scale and kW == scale
    out_dtype = x_nchw.dtype if out_dtype is None else out_dtype
    n_cols = Cout * scale * scale
    hw = H * W

    # Fold BatchNorm2d (eval mode, running stats) into a per-channel affine.
    a = gamma.astype(jnp.float32) / jnp.sqrt(running_var.astype(jnp.float32) + eps)
    b = beta.astype(jnp.float32) - running_mean.astype(jnp.float32) * a
    a2 = a.reshape(Cin, 1)
    b2 = b.reshape(Cin, 1)

    # ConvTranspose weight as a (Cout*s*s, Cin) matmul matrix (tiny, one-time).
    w2 = jnp.transpose(weight.reshape(Cin, n_cols))

    # Channels-first pixel layout: free reshape, no HBM transpose / pad of x.
    x3 = x_nchw.reshape(B, Cin, hw)

    x_it = x_nchw.dtype.itemsize
    w_it = w2.dtype.itemsize
    o_it = np.dtype(out_dtype).itemsize
    vmem_budget, vmem_limit = _vmem_limits()
    thw, n_tiles = _pick_tile(hw, B, Cin, n_cols, x_it, w_it, o_it, vmem_budget)

    cost = pl.CostEstimate(
        flops=int(2 * B * hw * Cin * n_cols),
        transcendentals=int(B * hw * Cin),
        bytes_accessed=int(B * Cin * hw * x_it + n_cols * Cin * w_it
                           + B * n_cols * hw * o_it),
    )

    out3 = pl.pallas_call(
        upscale_kernel,
        out_shape=jax.ShapeDtypeStruct((B, n_cols, hw), out_dtype),
        grid_spec=pltpu.PrefetchScalarGridSpec(
            num_scalar_prefetch=0,
            grid=(B, n_tiles),
            in_specs=[
                pl.BlockSpec((None, Cin, thw), lambda bi, ti: (bi, 0, ti)),  # x
                pl.BlockSpec((Cin, 1), lambda bi, ti: (0, 0)),               # BN scale
                pl.BlockSpec((Cin, 1), lambda bi, ti: (0, 0)),               # BN shift
                pl.BlockSpec((n_cols, Cin), lambda bi, ti: (0, 0)),          # weight
            ],
            out_specs=pl.BlockSpec((None, n_cols, thw),
                                   lambda bi, ti: (bi, 0, ti)),
        ),
        compiler_params=pltpu.CompilerParams(
            dimension_semantics=("parallel", "parallel"),
            vmem_limit_bytes=int(vmem_limit),
        ),
        cost_estimate=cost,
    )(x3, a2, b2, w2)

    # Pixel-shuffle back to NCHW (intrinsic to ConvTranspose; one XLA pass).
    # TODO(synk): fold this interleave into the kernel's output layout.
    out = out3.reshape(B, Cout, scale, scale, H, W)
    out = jnp.transpose(out, (0, 1, 4, 2, 5, 3))
    return out.reshape(B, Cout, H * scale, W * scale)


if __name__ == "__main__":
    key = jax.random.PRNGKey(0)
    k_x, k_w, k_g, k_b, k_m, k_v = jax.random.split(key, 6)

    # Cout * scale^2 = 128 -> lane-dense output stores even at toy sizes.
    B, Cin, H, W = 2, 32, 16, 16
    Cout, scale = 32, 2

    x = jax.random.normal(k_x, (B, Cin, H, W), dtype=jnp.float32).astype(jnp.bfloat16)
    weight = (jax.random.normal(k_w, (Cin, Cout, scale, scale), jnp.float32)
              * 0.1).astype(jnp.bfloat16)
    gamma = jax.random.normal(k_g, (Cin,), jnp.float32) * 0.1 + 1.0
    beta = jax.random.normal(k_b, (Cin,), jnp.float32) * 0.1
    running_mean = jax.random.normal(k_m, (Cin,), jnp.float32) * 0.1
    running_var = jax.random.uniform(k_v, (Cin,), jnp.float32,
                                     minval=0.5, maxval=1.5)

    out = upscale_forward(x, weight, gamma, beta, running_mean, running_var,
                          scale=scale)
    out = jax.block_until_ready(out)
    assert out.shape == (B, Cout, H * scale, W * scale)

    # Reference with a matched precision path (f32 BN+GELU, bf16 matmul, f32 acc).
    a_ref = gamma / jnp.sqrt(running_var + 1e-5)
    b_ref = beta - running_mean * a_ref
    y = _gelu_tanh(x.astype(jnp.float32) * a_ref[None, :, None, None]
                   + b_ref[None, :, None, None]).astype(jnp.bfloat16)
    ref = jnp.einsum('bihw,iokl->bohkwl', y, weight,
                     preferred_element_type=jnp.float32)
    ref = ref.reshape(B, Cout, H * scale, W * scale).astype(out.dtype)
    diff = float(jnp.max(jnp.abs(out.astype(jnp.float32) - ref.astype(jnp.float32))))
    assert diff < 0.1, f"max abs diff {diff}"

    print("KERNEL_OK")
</pallas_src>

<mosaic_0001>
module attributes {stable_mosaic.version = 11 : i64} {
  func.func @upscale_kernel(%arg0: i32, %arg1: i32, %arg2: memref<1x32x128xbf16, #tpu.memory_space<vmem>>, %arg3: memref<32x1xf32, #tpu.memory_space<vmem>>, %arg4: memref<32x1xf32, #tpu.memory_space<vmem>>, %arg5: memref<128x32xbf16, #tpu.memory_space<vmem>>, %arg6: memref<1x128x128xbf16, #tpu.memory_space<vmem>>) attributes {dimension_semantics = [#tpu.dimension_semantics<parallel>, #tpu.dimension_semantics<parallel>], iteration_bounds = array<i64: 2, 2>, scalar_prefetch = 0 : i64, scratch_operands = 0 : i64, tpu.core_type = #tpu.core_type<tc>, window_params = [{transform_indices = @transform_0, window_bounds = array<i64: 1, 32, 128>}, {pipeline_mode = #tpu.pipeline_mode<synchronous>, transform_indices = @transform_1, window_bounds = array<i64: 32, 1>}, {pipeline_mode = #tpu.pipeline_mode<synchronous>, transform_indices = @transform_2, window_bounds = array<i64: 32, 1>}, {pipeline_mode = #tpu.pipeline_mode<synchronous>, transform_indices = @transform_3, window_bounds = array<i64: 128, 32>}, {transform_indices = @transform_4, window_bounds = array<i64: 1, 128, 128>}]} {
    %c0 = arith.constant 0 : index
    %c0_0 = arith.constant 0 : index
    %c0_1 = arith.constant 0 : index
    %0 = vector.load %arg2[%c0, %c0_0, %c0_1] : memref<1x32x128xbf16, #tpu.memory_space<vmem>>, vector<1x32x128xbf16>
    %1 = vector.shape_cast %0 : vector<1x32x128xbf16> to vector<32x128xbf16>
    %2 = arith.extf %1 : vector<32x128xbf16> to vector<32x128xf32>
    %c0_2 = arith.constant 0 : index
    %c0_3 = arith.constant 0 : index
    %3 = vector.load %arg3[%c0_2, %c0_3] : memref<32x1xf32, #tpu.memory_space<vmem>>, vector<32x1xf32>
    %c0_4 = arith.constant 0 : index
    %c0_5 = arith.constant 0 : index
    %4 = vector.load %arg4[%c0_4, %c0_5] : memref<32x1xf32, #tpu.memory_space<vmem>>, vector<32x1xf32>
    %5 = vector.broadcast %3 : vector<32x1xf32> to vector<32x128xf32>
    %6 = arith.mulf %2, %5 : vector<32x128xf32>
    %7 = vector.broadcast %4 : vector<32x1xf32> to vector<32x128xf32>
    %8 = arith.addf %6, %7 : vector<32x128xf32>
    %cst = arith.constant 5.000000e-01 : f32
    %9 = vector.broadcast %cst : f32 to vector<32x128xf32>
    %10 = arith.mulf %9, %8 : vector<32x128xf32>
    %cst_6 = arith.constant 4.471500e-02 : f32
    %11 = vector.broadcast %cst_6 : f32 to vector<32x128xf32>
    %12 = arith.mulf %11, %8 : vector<32x128xf32>
    %13 = arith.mulf %12, %8 : vector<32x128xf32>
    %14 = arith.mulf %13, %8 : vector<32x128xf32>
    %15 = arith.addf %8, %14 : vector<32x128xf32>
    %cst_7 = arith.constant 0.797884583 : f32
    %16 = vector.broadcast %cst_7 : f32 to vector<32x128xf32>
    %17 = arith.mulf %16, %15 : vector<32x128xf32>
    %18 = math.tanh %17 : vector<32x128xf32>
    %cst_8 = arith.constant 1.000000e+00 : f32
    %19 = vector.broadcast %cst_8 : f32 to vector<32x128xf32>
    %20 = arith.addf %19, %18 : vector<32x128xf32>
    %21 = arith.mulf %10, %20 : vector<32x128xf32>
    %22 = arith.truncf %21 : vector<32x128xf32> to vector<32x128xbf16>
    %c0_9 = arith.constant 0 : index
    %c0_10 = arith.constant 0 : index
    %23 = vector.load %arg5[%c0_9, %c0_10] : memref<128x32xbf16, #tpu.memory_space<vmem>>, vector<128x32xbf16>
    %cst_11 = arith.constant dense<0.000000e+00> : vector<128x128xf32>
    %24 = tpu.matmul %23, %22, %cst_11 {dimension_numbers = #tpu.dot_dimension_numbers<[1], [0], [0], [1], [0, 0, 1, 1], [], []>} : vector<128x32xbf16>, vector<32x128xbf16>, vector<128x128xf32> -> vector<128x128xf32>
    %25 = arith.truncf %24 : vector<128x128xf32> to vector<128x128xbf16>
    %c0_12 = arith.constant 0 : index
    %c0_13 = arith.constant 0 : index
    %c0_14 = arith.constant 0 : index
    %26 = vector.load %arg6[%c0_12, %c0_13, %c0_14] : memref<1x128x128xbf16, #tpu.memory_space<vmem>>, vector<1x128x128xbf16>
    %27 = vector.shape_cast %26 : vector<1x128x128xbf16> to vector<128x128xbf16>
    %28 = vector.shape_cast %25 : vector<128x128xbf16> to vector<1x128x128xbf16>
    tpu.vector_store %arg6[%c0_12, %c0_13, %c0_14], %28 {strides = array<i32>} : memref<1x128x128xbf16, #tpu.memory_space<vmem>>, vector<1x128x128xbf16>,
    return
  }
  func.func @transform_0(%arg0: i32, %arg1: i32) -> (i32, i32, i32) {
    %c0_i32 = arith.constant 0 : i32
    %c0_i32_0 = arith.constant 0 : i32
    return %arg0, %c0_i32, %arg1 : i32, i32, i32
  }
  func.func @transform_1(%arg0: i32, %arg1: i32) -> (i32, i32) {
    %c0_i32 = arith.constant 0 : i32
    %c0_i32_0 = arith.constant 0 : i32
    %c0_i32_1 = arith.constant 0 : i32
    return %c0_i32, %c0_i32_0 : i32, i32
  }
  func.func @transform_2(%arg0: i32, %arg1: i32) -> (i32, i32) {
    %c0_i32 = arith.constant 0 : i32
    %c0_i32_0 = arith.constant 0 : i32
    %c0_i32_1 = arith.constant 0 : i32
    return %c0_i32, %c0_i32_0 : i32, i32
  }
  func.func @transform_3(%arg0: i32, %arg1: i32) -> (i32, i32) {
    %c0_i32 = arith.constant 0 : i32
    %c0_i32_0 = arith.constant 0 : i32
    %c0_i32_1 = arith.constant 0 : i32
    return %c0_i32, %c0_i32_0 : i32, i32
  }
  func.func @transform_4(%arg0: i32, %arg1: i32) -> (i32, i32, i32) {
    %c0_i32 = arith.constant 0 : i32
    %c0_i32_0 = arith.constant 0 : i32
    return %arg0, %c0_i32, %arg1 : i32, i32, i32
  }
}

</mosaic_0001>

<llo_original>
// kernel: tpu_custom_call.1
$region0: #{tpu_custom_call.1}
  #allocation0 [shape = 'u32[]', space=smem, size = 0x4, offset = 0x4, fixed_abs, tag = 'smem constant byte address 0x4 - core index']
  #allocation1 [shape = 'u32[144,128]{1,0:T(1,128)}', space=vmem, size = 0x12000, scoped, tag = 'internal scratch']
  %s0 = inlined_call_operand.vmem [shape: bf16[2,32,256], index: 0, kind: input, shape index: {}]
  %s1 = inlined_call_operand.vmem [shape: f32[32,1], index: 1, kind: input, shape index: {}]
  %s2 = inlined_call_operand.vmem [shape: f32[32,1], index: 2, kind: input, shape index: {}]
  %s3 = inlined_call_operand.vmem [shape: bf16[128,32], index: 3, kind: input, shape index: {}]
  %s4 = inlined_call_operand.hbm [shape: bf16[2,128,256], index: 4, kind: output, shape index: {}]
  %s5 = sld [smem:[#allocation0]]
  $region90: #{tpu_custom_call.1} parent=0
    _
  %s7 = ssub.s32 1, %s5
  %s8 = scalar_select 0, %s7, %s5
  $region1: #{tpu_custom_call.1} parent=0
    #allocation2 [shape = 'u8[16384]{0}', space=vmem, size = 0x4000, scoped, tag = 'input window, operand 0']
    #allocation3 [shape = 'u8[65536]{0}', space=vmem, size = 0x10000, scoped, tag = 'output window, operand 0']
    #allocation4 [shape = 's32[2]{0}', space=sflag, size = 0x8, scoped, tag = 'scoped memory for tpu_custom_call.1']
    %9 = vsyncpa [#allocation4], 0
    %s10 = scalar_lea.sflag [#allocation4], 1
    %11 = vsyncpa %s10, 0
    loop: start=0, step=1, limit=6
    $region2: #{tpu_custom_call.1} parent=1 // loop_pre_header
      _
    $region3: #{tpu_custom_call.1} parent=1 // loop_header
      %s13 = sphi 0, %s17
      %p14 = scmp.ge.s32.totalorder %s13, 6
      %s20 = sphi 0, %s32
      %s21 = sphi 0, %s28
      %s22 = sphi 0, %s20
      %s23 = sphi 0, %s21
      %s24 = sphi 0, %s22
      %s25 = sphi 0, %s23
      %s37 = sphi 0, %s39
      %s40 = sphi 0, %s37
      %s41 = sphi 0, %s40
      %s57 = sphi 0, %s41
      %s61 = sphi 0, %s61
      %s63 = sphi 0, %s61
      %s64 = sphi 0, %s63
      %s78 = sphi 0, %s64
      %s82 = sphi 0, %s82
      %s84 = sphi 0, %s82
      %s85 = sphi 0, %s84
      %s99 = sphi 0, %s85
      %s103 = sphi 0, %s103
      %s105 = sphi 0, %s103
      %s106 = sphi 0, %s105
      %s120 = sphi 0, %s106
      %s128 = sphi 0, %s130
      %s131 = sphi 0, %s128
      %s132 = sphi 0, %s131
      %s148 = sphi 0, %s132
    $region4: #{tpu_custom_call.1} parent=1 // loop_header_branch
      %16 = sbr.rel (%p14) target = $region8
    $region5: #{tpu_custom_call.1} parent=1 // loop_body
      %s18 = ssub.s32 %s13, 1
      %s19 = ssub.s32 %s13, 2
      %s26 = sadd.s32 1, %s21
      %p27 = scmp.ge.s32.totalorder %s26, 2
      %s28 = scalar_select %p27, 0, %s26
      %s29 = sadd.s32 1, %s20
      %s30 = scalar_select %p27, %s29, %s20
      %p31 = scmp.ge.s32.totalorder %s30, 2
      %s32 = scalar_select %p31, 0, %s30
      %s33 = ssub.s32 %s20, %s32
      %s34 = ssub.s32 %s21, %s28
      %s35 = sor.u32 %s33, %s34
      %p36 = scmp.eq.s32.totalorder %s35, 0
      %s38 = sadd.s32 %s37, 1
      %s39 = scalar_select %p36, %s37, %s38
      %p42 = pneg %p36
      %p43 = scmp.eq.s32.totalorder %s13, 3
      %p44 = por %p42, %p43
      %p45 = scmp.ne.s32.totalorder %s37, %s40
      %p46 = scmp.eq.s32.totalorder %s13, 0
      %p47 = por %p45, %p46
      %p48 = scmp.ne.s32.totalorder %s37, %s40
      %p49 = scmp.eq.s32.totalorder %s18, 3
      %p50 = por %p48, %p49
      %p51 = scmp.ne.s32.totalorder %s40, %s41
      %p52 = scmp.eq.s32.totalorder %s18, 0
      %p53 = por %p51, %p52
      %p54 = scmp.ne.s32.totalorder %s40, %s41
      %p55 = scmp.eq.s32.totalorder %s19, 3
      %p56 = por %p54, %p55
      %p58 = scmp.ne.s32.totalorder %s41, %s57
      %p59 = scmp.eq.s32.totalorder %s19, 0
      %p60 = por %p58, %p59
      %s62 = sadd.s32 %s61, 1
      %p65 = scmp.eq.s32.totalorder %s13, 3
      %p66 = scmp.ne.s32.totalorder %s61, %s63
      %p67 = scmp.eq.s32.totalorder %s13, 0
      %p68 = por %p66, %p67
      %p69 = scmp.ne.s32.totalorder %s61, %s63
      %p70 = scmp.eq.s32.totalorder %s18, 3
      %p71 = por %p69, %p70
      %p72 = scmp.ne.s32.totalorder %s63, %s64
      %p73 = scmp.eq.s32.totalorder %s18, 0
      %p74 = por %p72, %p73
      %p75 = scmp.ne.s32.totalorder %s63, %s64
      %p76 = scmp.eq.s32.totalorder %s19, 3
      %p77 = por %p75, %p76
      %p79 = scmp.ne.s32.totalorder %s64, %s78
      %p80 = scmp.eq.s32.totalorder %s19, 0
      %p81 = por %p79, %p80
      %s83 = sadd.s32 %s82, 1
      %p86 = scmp.eq.s32.totalorder %s13, 3
      %p87 = scmp.ne.s32.totalorder %s82, %s84
      %p88 = scmp.eq.s32.totalorder %s13, 0
      %p89 = por %p87, %p88
      %p90 = scmp.ne.s32.totalorder %s82, %s84
      %p91 = scmp.eq.s32.totalorder %s18, 3
      %p92 = por %p90, %p91
      %p93 = scmp.ne.s32.totalorder %s84, %s85
      %p94 = scmp.eq.s32.totalorder %s18, 0
      %p95 = por %p93, %p94
      %p96 = scmp.ne.s32.totalorder %s84, %s85
      %p97 = scmp.eq.s32.totalorder %s19, 3
      %p98 = por %p96, %p97
      %p100 = scmp.ne.s32.totalorder %s85, %s99
      %p101 = scmp.eq.s32.totalorder %s19, 0
      %p102 = por %p100, %p101
      %s104 = sadd.s32 %s103, 1
      %p107 = scmp.eq.s32.totalorder %s13, 3
      %p108 = scmp.ne.s32.totalorder %s103, %s105
      %p109 = scmp.eq.s32.totalorder %s13, 0
      %p110 = por %p108, %p109
      %p111 = scmp.ne.s32.totalorder %s103, %s105
      %p112 = scmp.eq.s32.totalorder %s18, 3
      %p113 = por %p111, %p112
      %p114 = scmp.ne.s32.totalorder %s105, %s106
      %p115 = scmp.eq.s32.totalorder %s18, 0
      %p116 = por %p114, %p115
      %p117 = scmp.ne.s32.totalorder %s105, %s106
      %p118 = scmp.eq.s32.totalorder %s19, 3
      %p119 = por %p117, %p118
      %p121 = scmp.ne.s32.totalorder %s106, %s120
      %p122 = scmp.eq.s32.totalorder %s19, 0
      %p123 = por %p121, %p122
      %s124 = ssub.s32 %s20, %s32
      %s125 = ssub.s32 %s21, %s28
      %s126 = sor.u32 %s124, %s125
      %p127 = scmp.eq.s32.totalorder %s126, 0
      %s129 = sadd.s32 %s128, 1
      %s130 = scalar_select %p127, %s128, %s129
      %p133 = pneg %p127
      %p134 = scmp.eq.s32.totalorder %s13, 3
      %p135 = por %p133, %p134
      %p136 = scmp.ne.s32.totalorder %s128, %s131
      %p137 = scmp.eq.s32.totalorder %s13, 0
      %p138 = por %p136, %p137
      %p139 = scmp.ne.s32.totalorder %s128, %s131
      %p140 = scmp.eq.s32.totalorder %s18, 3
      %p141 = por %p139, %p140
      %p142 = scmp.ne.s32.totalorder %s131, %s132
      %p143 = scmp.eq.s32.totalorder %s18, 0
      %p144 = por %p142, %p143
      %p145 = scmp.ne.s32.totalorder %s131, %s132
      %p146 = scmp.eq.s32.totalorder %s19, 3
      %p147 = por %p145, %p146
      %p149 = scmp.ne.s32.totalorder %s132, %s148
      %p150 = scmp.eq.s32.totalorder %s19, 0
      %p151 = por %p149, %p150
      %p152 = scmp.le.s32.totalorder 1, %s13
      %p153 = scmp.lt.s32.totalorder %s13, 5
      %p154 = pnand %p152, %p153
      %p155 = pneg %p154
      // Predicated region
      $region9: #{tpu_custom_call.1} parent=5 // pred_check
        _
      $region10: #{tpu_custom_call.1} parent=5 // pred_check_branch
        %157 = sbr.rel (%p154) target = $region12
      $region11: #{tpu_custom_call.1} parent=5 // pred_region
        %s158 = ssub.s32 %s13, 1
        // Predicated region
        $region13: #{tpu_custom_call.1} parent=11 // pred_check
          %p159 = pneg %p74
        $region14: #{tpu_custom_call.1} parent=11 // pred_check_branch
          %161 = sbr.rel (%p159) target = $region16
        $region15: #{tpu_custom_call.1} parent=11 // pred_region
          _
        $region16: #{tpu_custom_call.1} parent=11 // pred_fallthru
          _
        // Predicated region
        $region17: #{tpu_custom_call.1} parent=11 // pred_check
          %p162 = pneg %p95
        $region18: #{tpu_custom_call.1} parent=11 // pred_check_branch
          %164 = sbr.rel (%p162) target = $region20
        $region19: #{tpu_custom_call.1} parent=11 // pred_region
          _
        $region20: #{tpu_custom_call.1} parent=11 // pred_fallthru
          _
        // Predicated region
        $region21: #{tpu_custom_call.1} parent=11 // pred_check
          %p165 = pneg %p116
        $region22: #{tpu_custom_call.1} parent=11 // pred_check_branch
          %167 = sbr.rel (%p165) target = $region24
        $region23: #{tpu_custom_call.1} parent=11 // pred_region
          _
        $region24: #{tpu_custom_call.1} parent=11 // pred_fallthru
          _
      $region12: #{tpu_custom_call.1} parent=5 // pred_fallthru
        _
      %p168 = scmp.lt.s32.totalorder %s13, 4
      // Predicated region
      $region25: #{tpu_custom_call.1} parent=5 // pred_check
        %p169 = pneg %p168
      $region26: #{tpu_custom_call.1} parent=5 // pred_check_branch
        %171 = sbr.rel (%p169) target = $region28
      $region27: #{tpu_custom_call.1} parent=5 // pred_region
        // Predicated region
        $region29: #{tpu_custom_call.1} parent=27 // pred_check
          %p172 = pneg %p47
        $region30: #{tpu_custom_call.1} parent=27 // pred_check_branch
          %174 = sbr.rel (%p172) target = $region32
        $region31: #{tpu_custom_call.1} parent=27 // pred_region
          %s175 = sand.u32 %s37, 1
          %s176 = sand.u32 %s37, 1
          %s177 = smul.addr %s176, 16
          %s178 = scalar_lea.vmem [#allocation2], %s177
          %s179 = smul.addr %s20, 8
          %s180 = sadd.s32 %s21, %s179
          %s181 = smul.addr %s180, 4
          %s182 = scalar_lea.vmem %s0, %s181
          // Predicated region
          $region33: #{tpu_custom_call.1} parent=31 // pred_check
            _
          $region34: #{tpu_custom_call.1} parent=31 // pred_check_branch
            %184 = sbr.rel (0) target = $region36
          $region35: #{tpu_custom_call.1} parent=31 // pred_region
            // Predicated region
            $region37: #{tpu_custom_call.1} parent=35 // pred_check
              _
            $region38: #{tpu_custom_call.1} parent=35 // pred_check_branch
              %186 = sbr.rel target = $region40
            $region39: #{tpu_custom_call.1} parent=35 // pred_region
              // Predicated region
              $region52: #{tpu_custom_call.1} parent=39 // pred_check
                _
              $region53: #{tpu_custom_call.1} parent=39 // pred_check_branch
                %208 = sbr.rel (0) target = $region55
              $region54: #{tpu_custom_call.1} parent=39 // pred_region
                loop: start=0, step=1, limit=1
                $region56: #{tpu_custom_call.1} parent=54 // loop_pre_header
                  _
                $region57: #{tpu_custom_call.1} parent=54 // loop_header
                  %s210 = sphi 0, %s214
                  %p211 = scmp.ge.s32.totalorder %s210, 1
                  %s215 = sphi %s182, %s182
                  %s216 = sphi %s178, %s178
                $region58: #{tpu_custom_call.1} parent=54 // loop_header_branch
                  %213 = sbr.rel (%p211) target = $region62
                $region59: #{tpu_custom_call.1} parent=54 // loop_body
                  _
                $region60: #{tpu_custom_call.1} parent=54 // loop_footer
                  %s214 = sadd.s32 1, %s210
                $region61: #{tpu_custom_call.1} parent=54 // loop_footer_branch
                  %209 = sbr.rel target = $region57
                $region62: #{tpu_custom_call.1} parent=54 // loop_exit
                  _
                %s218 = ssub.s32 16, 1
                loop: start=0, step=1, limit=1
                $region63: #{tpu_custom_call.1} parent=54 // loop_pre_header
                  _
                $region64: #{tpu_custom_call.1} parent=54 // loop_header
                  %s220 = sphi 0, %s224
                  %p221 = scmp.ge.s32.totalorder %s220, 1
                  %s225 = sphi %s182, %s182
                  %s226 = sphi %s178, %s178
                $region65: #{tpu_custom_call.1} parent=54 // loop_header_branch
                  %223 = sbr.rel (%p221) target = $region69
                $region66: #{tpu_custom_call.1} parent=54 // loop_body
                  %v227 = vld [vmem:[%s225] sm:%s218]
                  %228 = vst [vmem:[%s226] sm:%s218] %v227
                  %v229 = vld [vmem:[%s225 + $0x8] sm:%s218]
                  %230 = vst [vmem:[%s226 + $0x4] sm:%s218] %v229
                  %v231 = vld [vmem:[%s225 + $0x10] sm:%s218]
                  %232 = vst [vmem:[%s226 + $0x8] sm:%s218] %v231
                  %v233 = vld [vmem:[%s225 + $0x18] sm:%s218]
                  %234 = vst [vmem:[%s226 + $0xc] sm:%s218] %v233
                $region67: #{tpu_custom_call.1} parent=54 // loop_footer
                  %s224 = sadd.s32 1, %s220
                $region68: #{tpu_custom_call.1} parent=54 // loop_footer_branch
                  %219 = sbr.rel target = $region64
                $region69: #{tpu_custom_call.1} parent=54 // loop_exit
                  _
              $region55: #{tpu_custom_call.1} parent=39 // pred_fallthru
                _
            $region40: #{tpu_custom_call.1} parent=35 // pred_fallthru
              _
            // Predicated region
            $region41: #{tpu_custom_call.1} parent=35 // pred_check
              _
            $region42: #{tpu_custom_call.1} parent=35 // pred_check_branch
              %188 = sbr.rel (0) target = $region44
            $region43: #{tpu_custom_call.1} parent=35 // pred_region
              %s190 = ssub.s32 16, 1
              loop: start=0, step=1, limit=1
              $region45: #{tpu_custom_call.1} parent=43 // loop_pre_header
                _
              $region46: #{tpu_custom_call.1} parent=43 // loop_header
                %s192 = sphi 0, %s196
                %p193 = scmp.ge.s32.totalorder %s192, 1
                %s197 = sphi %s182, %s182
                %s198 = sphi %s178, %s178
              $region47: #{tpu_custom_call.1} parent=43 // loop_header_branch
                %195 = sbr.rel (%p193) target = $region51
              $region48: #{tpu_custom_call.1} parent=43 // loop_body
                %v199 = vld [vmem:[%s197] sm:%s190]
                %200 = vst [vmem:[%s198] sm:%s190] %v199
                %v201 = vld [vmem:[%s197 + $0x8] sm:%s190]
                %202 = vst [vmem:[%s198 + $0x4] sm:%s190] %v201
                %v203 = vld [vmem:[%s197 + $0x10] sm:%s190]
                %204 = vst [vmem:[%s198 + $0x8] sm:%s190] %v203
                %v205 = vld [vmem:[%s197 + $0x18] sm:%s190]
                %206 = vst [vmem:[%s198 + $0xc] sm:%s190] %v205
              $region49: #{tpu_custom_call.1} parent=43 // loop_footer
                %s196 = sadd.s32 1, %s192
              $region50: #{tpu_custom_call.1} parent=43 // loop_footer_branch
                %191 = sbr.rel target = $region46
              $region51: #{tpu_custom_call.1} parent=43 // loop_exit
                _
            $region44: #{tpu_custom_call.1} parent=35 // pred_fallthru
              _
          $region36: #{tpu_custom_call.1} parent=31 // pred_fallthru
            _
          %235 = vnop
        $region32: #{tpu_custom_call.1} parent=27 // pred_fallthru
          _
      $region28: #{tpu_custom_call.1} parent=5 // pred_fallthru
        _
      %p236 = scmp.le.s32.totalorder 1, %s13
      %p237 = scmp.lt.s32.totalorder %s13, 5
      %p238 = pnand %p236, %p237
      %p239 = pneg %p238
      // Predicated region
      $region70: #{tpu_custom_call.1} parent=5 // pred_check
        _
      $region71: #{tpu_custom_call.1} parent=5 // pred_check_branch
        %241 = sbr.rel (%p238) target = $region73
      $region72: #{tpu_custom_call.1} parent=5 // pred_region
        %s242 = ssub.s32 %s13, 1
        %s243 = sand.u32 %s40, 1
        %s244 = sand.u32 %s40, 1
        %s245 = smul.addr %s244, 16
        %s246 = scalar_lea.vmem [#allocation2], %s245
        // Predicated region
        $region74: #{tpu_custom_call.1} parent=72 // pred_check
          %p247 = pneg %p53
        $region75: #{tpu_custom_call.1} parent=72 // pred_check_branch
          %249 = sbr.rel (%p247) target = $region77
        $region76: #{tpu_custom_call.1} parent=72 // pred_region
          _
        $region77: #{tpu_custom_call.1} parent=72 // pred_fallthru
          _
        %s250 = sand.u32 %s40, 1
        %s251 = sand.u32 %s40, 1
        %s252 = smul.addr %s251, 16
        %s253 = scalar_lea.vmem [#allocation2], %s252
        %p254 = pneg %p53
        %p255 = pneg %p50
        %p256 = pneg %p74
        %p257 = pneg %p71
        %p258 = pneg %p95
        %p259 = pneg %p92
        %p260 = pneg %p116
        %p261 = pneg %p113
        %p262 = pneg %p144
        %p263 = pneg %p141
        %s264 = sand.u32 %s131, 1
        %s265 = scalar_lea.sflag [#allocation4], %s264
        %s266 = sand.u32 %s131, 1
        %s267 = smul.addr %s266, 64
        %s268 = scalar_lea.vmem [#allocation3], %s267
        %v270 = vld [vmem:[%s246] sm:$0xf]
        %v271 = vld [vmem:[%s246 + $0x4] sm:$0xf]
        %v272 = vld [vmem:[%s246 + $0x8] sm:$0xf]
        %v273 = vld [vmem:[%s246 + $0xc] sm:$0xf]
        %v274 = vunpack.c.l.bf16 %v270
        %v275 = vunpack.c.l.bf16 %v271
        %v276 = vunpack.c.l.bf16 %v272
        %v277 = vunpack.c.l.bf16 %v273
        %v278 = vld [vmem:[%s1] sm:$0xff]
        %v279 = vld [vmem:[%s1 + $0x8] sm:$0xff]
        %v280 = vld [vmem:[%s1 + $0x10] sm:$0xff]
        %v281 = vld [vmem:[%s1 + $0x18] sm:$0xff]
        %v282 = vld [vmem:[%s2] sm:$0xff]
        %v283 = vld [vmem:[%s2 + $0x8] sm:$0xff]
        %v284 = vld [vmem:[%s2 + $0x10] sm:$0xff]
        %v285 = vld [vmem:[%s2 + $0x18] sm:$0xff]
        %287 = vset.pattern.permute.xlu0 0
        %288 = vperm.xlu0 %287, %v278
        %v289 = vpop.permute.xlu0 %288
        %292 = vset.pattern.permute.xlu0 0
        %293 = vperm.xlu0 %292, %v279
        %v294 = vpop.permute.xlu0 %293
        %297 = vset.pattern.permute.xlu0 0
        %298 = vperm.xlu0 %297, %v280
        %v299 = vpop.permute.xlu0 %298
        %302 = vset.pattern.permute.xlu0 0
        %303 = vperm.xlu0 %302, %v281
        %v304 = vpop.permute.xlu0 %303
        %v306 = vmul.f32 %v274, %v289
        %v307 = vmul.f32 %v275, %v294
        %v308 = vmul.f32 %v276, %v299
        %v309 = vmul.f32 %v277, %v304
        %311 = vset.pattern.permute.xlu0 0
        %312 = vperm.xlu0 %311, %v282
        %v313 = vpop.permute.xlu0 %312
        %316 = vset.pattern.permute.xlu0 0
        %317 = vperm.xlu0 %316, %v283
        %v318 = vpop.permute.xlu0 %317
        %321 = vset.pattern.permute.xlu0 0
        %322 = vperm.xlu0 %321, %v284
        %v323 = vpop.permute.xlu0 %322
        %326 = vset.pattern.permute.xlu0 0
        %327 = vperm.xlu0 %326, %v285
        %v328 = vpop.permute.xlu0 %327
        %v330 = vadd.f32 %v306, %v313
        %v331 = vadd.f32 %v307, %v318
        %v332 = vadd.f32 %v308, %v323
        %v333 = vadd.f32 %v309, %v328
        %v334 = vmul.f32 %v330, 0.5
        %v335 = vmul.f32 %v331, 0.5
        %v336 = vmul.f32 %v332, 0.5
        %v337 = vmul.f32 %v333, 0.5
        %v338 = vmul.f32 %v330, 0.044715
        %v339 = vmul.f32 %v331, 0.044715
        %v340 = vmul.f32 %v332, 0.044715
        %v341 = vmul.f32 %v333, 0.044715
        %v342 = vmul.f32 %v338, %v330
        %v343 = vmul.f32 %v339, %v331
        %v344 = vmul.f32 %v340, %v332
        %v345 = vmul.f32 %v341, %v333
        %v346 = vmul.f32 %v342, %v330
        %v347 = vmul.f32 %v343, %v331
        %v348 = vmul.f32 %v344, %v332
        %v349 = vmul.f32 %v345, %v333
        %v350 = vadd.f32 %v330, %v346
        %v351 = vadd.f32 %v331, %v347
        %v352 = vadd.f32 %v332, %v348
        %v353 = vadd.f32 %v333, %v349
        %v354 = vmul.f32 %v350, 0.7978846
        %v355 = vmul.f32 %v351, 0.7978846
        %v356 = vmul.f32 %v352, 0.7978846
        %v357 = vmul.f32 %v353, 0.7978846
        %v358 = vtanh.pop %v354
        %v359 = vtanh.pop %v355
        %v360 = vtanh.pop %v356
        %v361 = vtanh.pop %v357
        %v362 = vadd.f32 %v358, 1.0
        %v363 = vadd.f32 %v359, 1.0
        %v364 = vadd.f32 %v360, 1.0
        %v365 = vadd.f32 %v361, 1.0
        %v366 = vmul.f32 %v334, %v362
        %v367 = vmul.f32 %v335, %v363
        %v368 = vmul.f32 %v336, %v364
        %v369 = vmul.f32 %v337, %v365
        %v370 = vpack.c.bf16 %v367, %v366
        %v371 = vpack.c.bf16 %v369, %v368
        %v372 = vld [vmem:[%s3] sm:$0xf]
        %v373 = vld [vmem:[%s3 + $0x4] sm:$0xf]
        %v374 = vld [vmem:[%s3 + $0x8] sm:$0xf]
        %v375 = vld [vmem:[%s3 + $0xc] sm:$0xf]
        %v376 = vld [vmem:[%s3 + $0x10] sm:$0xf]
        %v377 = vld [vmem:[%s3 + $0x14] sm:$0xf]
        %v378 = vld [vmem:[%s3 + $0x18] sm:$0xf]
        %v379 = vld [vmem:[%s3 + $0x1c] sm:$0xf]
        %v380 = vld [vmem:[%s3 + $0x20] sm:$0xf]
        %v381 = vld [vmem:[%s3 + $0x24] sm:$0xf]
        %v382 = vld [vmem:[%s3 + $0x28] sm:$0xf]
        %v383 = vld [vmem:[%s3 + $0x2c] sm:$0xf]
        %v384 = vld [vmem:[%s3 + $0x30] sm:$0xf]
        %v385 = vld [vmem:[%s3 + $0x34] sm:$0xf]
        %v386 = vld [vmem:[%s3 + $0x38] sm:$0xf]
        %v387 = vld [vmem:[%s3 + $0x3c] sm:$0xf]
        %v404 = vunpack.c.l.b16 %v372
        %v405 = vunpack.c.l.b16 %v373
        %v406 = vunpack.c.l.b16 %v374
        %v407 = vunpack.c.l.b16 %v375
        %v408 = vunpack.c.l.b16 %v376
        %v409 = vunpack.c.l.b16 %v377
        %v410 = vunpack.c.l.b16 %v378
        %v411 = vunpack.c.l.b16 %v379
        %v412 = vunpack.c.l.b16 %v380
        %v413 = vunpack.c.l.b16 %v381
        %v414 = vunpack.c.l.b16 %v382
        %v415 = vunpack.c.l.b16 %v383
        %v416 = vunpack.c.l.b16 %v384
        %v417 = vunpack.c.l.b16 %v385
        %v418 = vunpack.c.l.b16 %v386
        %v419 = vunpack.c.l.b16 %v387
        %v420 = vpack.c.b16 %v405, %v404
        %v421 = vpack.c.b16 %v407, %v406
        %v422 = vpack.c.b16 %v409, %v408
        %v423 = vpack.c.b16 %v411, %v410
        %v424 = vpack.c.b16 %v413, %v412
        %v425 = vpack.c.b16 %v415, %v414
        %v426 = vpack.c.b16 %v417, %v416
        %v427 = vpack.c.b16 %v419, %v418
        %vm428 = vcmask 261120
        %v430 = vsel %vm428, %v420, 0
        %v433 = vsel %vm428, %v421, 0
        %v436 = vsel %vm428, %v422, 0
        %v439 = vsel %vm428, %v423, 0
        %v442 = vsel %vm428, %v424, 0
        %v445 = vsel %vm428, %v425, 0
        %v448 = vsel %vm428, %v426, 0
        %v451 = vsel %vm428, %v427, 0
        %453 = vmatprep.subr.bf16.mxu0 0
        %454 = vmatpush1.bf16.msra.mxu0 0
        %455 = vmatprep.subr.bf16.mxu0 0
        %456 = vmatpush1.bf16.msra.mxu0 0
        %457 = vmatprep.subr.bf16.mxu0 0
        %458 = vmatpush1.bf16.msra.mxu0 0
        %459 = vmatprep.subr.bf16.mxu0 0
        %460 = vmatpush1.bf16.msra.mxu0 0
        %461 = vmatprep.subr.bf16.mxu0 0
        %462 = vmatpush1.bf16.msra.mxu0 0
        %463 = vmatprep.subr.bf16.mxu0 0
        %464 = vmatpush1.bf16.msra.mxu0 0
        %465 = vmatprep.subr.bf16.mxu0 0
        %466 = vmatpush1.bf16.msra.mxu0 %v371
        %467 = vmatprep.subr.bf16.mxu0 0
        %468 = vmatpush1.bf16.msra.mxu0 %v370
        %469 = vmatprep.subr.bf16.mxu0 0
        %470 = vmatpush2.bf16.msra.mxu0 0
        %471 = vmatprep.subr.bf16.mxu0 0
        %472 = vmatpush2.bf16.msra.mxu0 0
        %473 = vmatprep.subr.bf16.mxu0 0
        %474 = vmatpush2.bf16.msra.mxu0 0
        %475 = vmatprep.subr.bf16.mxu0 0
        %476 = vmatpush2.bf16.msra.mxu0 0
        %477 = vmatprep.subr.bf16.mxu0 0
        %478 = vmatpush2.bf16.msra.mxu0 0
        %479 = vmatprep.subr.bf16.mxu0 0
        %480 = vmatpush2.bf16.msra.mxu0 0
        %481 = vmatprep.subr.bf16.mxu0 0
        %482 = vmatpush2.bf16.msra.mxu0 0
        %483 = vmatprep.subr.bf16.mxu0 0
        %484 = vmatpush2.bf16.msra.mxu0 0
        %485 = vmatprep.mubr.bf16.mxu0 0
        %486 = vmatmul.mubr.bf16.gmra.mxu0 %v430
        %v487 = vpop.f32.mrf.mxu0
        %v488 = vadd.f32 0.0, %v487
        %v489 = vpop.f32.mrf.mxu0
        %v490 = vpop.f32.mrf.mxu0
        %v491 = vadd.f32 0.0, %v490
        %v492 = vpop.f32.mrf.mxu0
        %493 = vmatprep.mubr.bf16.mxu0 0
        %494 = vmatmul.mubr.bf16.gmra.mxu0 %v433
        %v495 = vpop.f32.mrf.mxu0
        %v496 = vadd.f32 0.0, %v495
        %v497 = vpop.f32.mrf.mxu0
        %v498 = vpop.f32.mrf.mxu0
        %v499 = vadd.f32 0.0, %v498
        %v500 = vpop.f32.mrf.mxu0
        %501 = vmatprep.mubr.bf16.mxu0 0
        %502 = vmatmul.mubr.bf16.gmra.mxu0 %v436
        %v503 = vpop.f32.mrf.mxu0
        %v504 = vadd.f32 0.0, %v503
        %v505 = vpop.f32.mrf.mxu0
        %v506 = vpop.f32.mrf.mxu0
        %v507 = vadd.f32 0.0, %v506
        %v508 = vpop.f32.mrf.mxu0
        %509 = vmatprep.mubr.bf16.mxu0 0
        %510 = vmatmul.mubr.bf16.gmra.mxu0 %v439
        %v511 = vpop.f32.mrf.mxu0
        %v512 = vadd.f32 0.0, %v511
        %v513 = vpop.f32.mrf.mxu0
        %v514 = vpop.f32.mrf.mxu0
        %v515 = vadd.f32 0.0, %v514
        %v516 = vpop.f32.mrf.mxu0
        %517 = vmatprep.mubr.bf16.mxu0 0
        %518 = vmatmul.mubr.bf16.gmra.mxu0 %v442
        %v519 = vpop.f32.mrf.mxu0
        %v520 = vadd.f32 0.0, %v519
        %v521 = vpop.f32.mrf.mxu0
        %v522 = vpop.f32.mrf.mxu0
        %v523 = vadd.f32 0.0, %v522
        %v524 = vpop.f32.mrf.mxu0
        %525 = vmatprep.mubr.bf16.mxu0 0
        %526 = vmatmul.mubr.bf16.gmra.mxu0 %v445
        %v527 = vpop.f32.mrf.mxu0
        %v528 = vadd.f32 0.0, %v527
        %v529 = vpop.f32.mrf.mxu0
        %v530 = vpop.f32.mrf.mxu0
        %v531 = vadd.f32 0.0, %v530
        %v532 = vpop.f32.mrf.mxu0
        %533 = vmatprep.mubr.bf16.mxu0 0
        %534 = vmatmul.mubr.bf16.gmra.mxu0 %v448
        %v535 = vpop.f32.mrf.mxu0
        %v536 = vadd.f32 0.0, %v535
        %v537 = vpop.f32.mrf.mxu0
        %v538 = vpop.f32.mrf.mxu0
        %v539 = vadd.f32 0.0, %v538
        %v540 = vpop.f32.mrf.mxu0
        %541 = vmatprep.mubr.bf16.mxu0 0
        %542 = vmatmul.mubr.bf16.gmra.mxu0 %v451
        %v543 = vpop.f32.mrf.mxu0
        %v544 = vadd.f32 0.0, %v543
        %v545 = vpop.f32.mrf.mxu0
        %v546 = vpop.f32.mrf.mxu0
        %v547 = vadd.f32 0.0, %v546
        %v548 = vpop.f32.mrf.mxu0
        %549 = vdwg.mxu0
        %v550 = vpack.c.bf16 %v491, %v488
        %v551 = vpack.c.bf16 %v499, %v496
        %v552 = vpack.c.bf16 %v507, %v504
        %v553 = vpack.c.bf16 %v515, %v512
        %v554 = vpack.c.bf16 %v523, %v520
        %v555 = vpack.c.bf16 %v531, %v528
        %v556 = vpack.c.bf16 %v539, %v536
        %v557 = vpack.c.bf16 %v547, %v544
        %v566 = vunpack.c.l.b16 %v550
        %v567 = vunpack.c.h.b16 %v550
        %v568 = vunpack.c.l.b16 %v551
        %v569 = vunpack.c.h.b16 %v551
        %v570 = vunpack.c.l.b16 %v552
        %v571 = vunpack.c.h.b16 %v552
        %v572 = vunpack.c.l.b16 %v553
        %v573 = vunpack.c.h.b16 %v553
        %v574 = vunpack.c.l.b16 %v554
        %v575 = vunpack.c.h.b16 %v554
        %v576 = vunpack.c.l.b16 %v555
        %v577 = vunpack.c.h.b16 %v555
        %v578 = vunpack.c.l.b16 %v556
        %v579 = vunpack.c.h.b16 %v556
        %v580 = vunpack.c.l.b16 %v557
        %v581 = vunpack.c.h.b16 %v557
        %v582 = vpack.c.b16 %v566, %v566
        %v583 = vpack.c.b16 %v567, %v567
        %v584 = vpack.c.b16 %v568, %v568
        %v585 = vpack.c.b16 %v569, %v569
        %v586 = vpack.c.b16 %v570, %v570
        %v587 = vpack.c.b16 %v571, %v571
        %v588 = vpack.c.b16 %v572, %v572
        %v589 = vpack.c.b16 %v573, %v573
        %v590 = vpack.c.b16 %v574, %v574
        %v591 = vpack.c.b16 %v575, %v575
        %v592 = vpack.c.b16 %v576, %v576
        %v593 = vpack.c.b16 %v577, %v577
        %v594 = vpack.c.b16 %v578, %v578
        %v595 = vpack.c.b16 %v579, %v579
        %v596 = vpack.c.b16 %v580, %v580
        %v597 = vpack.c.b16 %v581, %v581
        %614 = vst [vmem:[%s268] sm:$0xf] %v582
        %615 = vst [vmem:[%s268 + $0x4] sm:$0xf] %v583
        %616 = vst [vmem:[%s268 + $0x8] sm:$0xf] %v584
        %617 = vst [vmem:[%s268 + $0xc] sm:$0xf] %v585
        %618 = vst [vmem:[%s268 + $0x10] sm:$0xf] %v586
        %619 = vst [vmem:[%s268 + $0x14] sm:$0xf] %v587
        %620 = vst [vmem:[%s268 + $0x18] sm:$0xf] %v588
        %621 = vst [vmem:[%s268 + $0x1c] sm:$0xf] %v589
        %622 = vst [vmem:[%s268 + $0x20] sm:$0xf] %v590
        %623 = vst [vmem:[%s268 + $0x24] sm:$0xf] %v591
        %624 = vst [vmem:[%s268 + $0x28] sm:$0xf] %v592
        %625 = vst [vmem:[%s268 + $0x2c] sm:$0xf] %v593
        %626 = vst [vmem:[%s268 + $0x30] sm:$0xf] %v594
        %627 = vst [vmem:[%s268 + $0x34] sm:$0xf] %v595
        %628 = vst [vmem:[%s268 + $0x38] sm:$0xf] %v596
        %629 = vst [vmem:[%s268 + $0x3c] sm:$0xf] %v597
        %s630 = sand.u32 %s131, 1
        %s631 = scalar_lea.sflag [#allocation4], %s630
        %s632 = sand.u32 %s131, 1
        %s633 = smul.addr %s632, 64
        %s634 = scalar_lea.vmem [#allocation3], %s633
        // Predicated region
        $region78: #{tpu_custom_call.1} parent=72 // pred_check
          %p635 = pneg %p141
        $region79: #{tpu_custom_call.1} parent=72 // pred_check_branch
          %637 = sbr.rel (%p635) target = $region81
        $region80: #{tpu_custom_call.1} parent=72 // pred_region
          %s639 = ssub.s32 1024, 1024
          %640 = vsyncadd %s631, %s639
          %s641 = smul.addr %s22, 32
          %s642 = sadd.s32 %s23, %s641
          %s643 = smul.addr %s642, 64
          %s644 = scalar_lea.hbm %s4, %s643
          %s645 = sshll.u32 %s634, 4
          %s646 = int_to_ptr.vmem [resolvable:$true] %s645
          %651 = dma.vmem_to_hbm [thread:$0]  %s646, 1024, %s644, %s631, 64, 128, 4
        $region81: #{tpu_custom_call.1} parent=72 // pred_fallthru
          _
      $region73: #{tpu_custom_call.1} parent=5 // pred_fallthru
        _
      %p652 = scmp.le.s32.totalorder 2, %s13
      // Predicated region
      $region82: #{tpu_custom_call.1} parent=5 // pred_check
        %p653 = pneg %p652
      $region83: #{tpu_custom_call.1} parent=5 // pred_check_branch
        %655 = sbr.rel (%p653) target = $region85
      $region84: #{tpu_custom_call.1} parent=5 // pred_region
        %s656 = ssub.s32 %s13, 2
        // Predicated region
        $region86: #{tpu_custom_call.1} parent=84 // pred_check
          %p657 = pneg %p147
        $region87: #{tpu_custom_call.1} parent=84 // pred_check_branch
          %659 = sbr.rel (%p657) target = $region89
        $region88: #{tpu_custom_call.1} parent=84 // pred_region
          %s660 = sand.u32 %s132, 1
          %s661 = scalar_lea.sflag [#allocation4], %s660
          %s662 = sand.u32 %s132, 1
          %s663 = smul.addr %s662, 64
          %s664 = scalar_lea.vmem [#allocation3], %s663
          %665 = dma.done %s661, 1024
        $region89: #{tpu_custom_call.1} parent=84 // pred_fallthru
          _
      $region85: #{tpu_custom_call.1} parent=5 // pred_fallthru
        _
    $region6: #{tpu_custom_call.1} parent=1 // loop_footer
      %s17 = sadd.s32 1, %s13
    $region7: #{tpu_custom_call.1} parent=1 // loop_footer_branch
      %12 = sbr.rel target = $region3
    $region8: #{tpu_custom_call.1} parent=1 // loop_exit
      _
    %666 = vsyncpa [#allocation4], 1
    %s667 = scalar_lea.sflag [#allocation4], 1
    %668 = vsyncpa %s667, 1

</llo_original>
